<compile_context>
chip_gen: v6e
topology: v6e:2x2x1
jax: 0.10.0
libtpu: 0.0.40
codegen_flags: <defaults>
</compile_context>

<pallas_src>
import functools

import jax
import jax.numpy as jnp
from jax.experimental import pallas as pl
from jax.experimental.pallas import tpu as pltpu


def _round_up(v, m):
    return (v + m - 1) // m * m


def gcn_layer1_kernel(a_ref, x_ref, w1_ref, b1_ref, w2_ref, hw2_ref, acc_ref):
    """Grid = (row tile i ["parallel"], reduction tile k ["arbitrary"]).

    Inner loop : acc[i] (=/+=) A[i,k] @ X[k]            (bf16 MXU, f32 accum)
    Epilogue   : HW2[i] = relu(acc[i] @ W1 + b1) @ W2   (f32, once per row tile)
    """
    k = pl.program_id(1)
    nk = pl.num_programs(1)

    prod = jnp.dot(a_ref[...], x_ref[...], preferred_element_type=jnp.float32)

    @pl.when(k == 0)
    def _write():
        acc_ref[...] = prod

    @pl.when(k > 0)
    def _accum():
        acc_ref[...] += prod

    @pl.when(k == nk - 1)
    def _epilogue():
        h = jnp.maximum(
            jnp.dot(acc_ref[...], w1_ref[...],
                    preferred_element_type=jnp.float32) + b1_ref[...], 0.0)
        hw2_ref[...] = jnp.dot(
            h, w2_ref[...], preferred_element_type=jnp.float32
        ).astype(hw2_ref.dtype)


def gcn_layer2_kernel(a_ref, hw2_ref, b2_ref, o_ref, acc_ref):
    """Grid = (row tile i ["parallel"], reduction tile k ["arbitrary"]).

    Inner loop : acc[i] (=/+=) A[i,k] @ HW2[k]
    Epilogue   : OUT[i] = acc[i] + b2
    """
    k = pl.program_id(1)
    nk = pl.num_programs(1)

    prod = jnp.dot(a_ref[...], hw2_ref[...], preferred_element_type=jnp.float32)

    @pl.when(k == 0)
    def _write():
        acc_ref[...] = prod

    @pl.when(k > 0)
    def _accum():
        acc_ref[...] += prod

    @pl.when(k == nk - 1)
    def _epilogue():
        o_ref[...] = (acc_ref[...] + b2_ref[...]).astype(o_ref.dtype)


def build_normalized_adjacency(edge_index, num_nodes):
    """Dense A_hat = D^{-1/2}(A + I)D^{-1/2} from edge_index [2, E] (JAX glue)."""
    src, dst = edge_index[0], edge_index[1]
    a = jnp.zeros((num_nodes, num_nodes), dtype=jnp.float32)
    a = a.at[dst, src].set(1.0)
    a = a.at[src, dst].set(1.0)
    a = a + jnp.eye(num_nodes, dtype=jnp.float32)
    a = jnp.minimum(a, 1.0)  # dedupe multi-edges / self-loops
    deg = jnp.sum(a, axis=1)
    inv_sqrt_deg = jnp.where(deg > 0, jax.lax.rsqrt(deg), 0.0)
    return inv_sqrt_deg[:, None] * a * inv_sqrt_deg[None, :]


def stgnn_forward(x, edge_index, params, *, tile_n=None,
                  compute_dtype=jnp.bfloat16,
                  vmem_limit_bytes=64 * 1024 * 1024):
    """Equivalent of STGNN.forward: relu(conv1(x, ei)) -> conv2(., ei)."""
    n, f_in = x.shape
    hidden = params["w1"].shape[1]
    out_dim = params["w2"].shape[1]

    # Tile choice: biggest lane/sublane-dense tile up to 512 (256x256 MXU on
    # v6e/v7x, amortizes ~0.35us/grid-step overhead); small graphs stay small.
    if tile_n is None:
        tile_n = min(512, _round_up(max(n, 128), 128))

    a_hat = build_normalized_adjacency(edge_index, n)

    # Lane-dense zero padding (multiples of 128 on last dims, tile_n on rows).
    n_pad = _round_up(max(n, tile_n), tile_n)
    f_in_pad = _round_up(f_in, 128)
    hidden_pad = _round_up(hidden, 128)
    out_pad = _round_up(out_dim, 128)

    a_p = jnp.zeros((n_pad, n_pad), compute_dtype).at[:n, :n].set(
        a_hat.astype(compute_dtype))
    x_p = jnp.zeros((n_pad, f_in_pad), compute_dtype).at[:n, :f_in].set(
        x.astype(compute_dtype))
    w1_p = jnp.zeros((f_in_pad, hidden_pad), jnp.float32).at[:f_in, :hidden].set(
        params["w1"].astype(jnp.float32))
    b1_p = jnp.zeros((1, hidden_pad), jnp.float32).at[0, :hidden].set(
        params["b1"].astype(jnp.float32))
    w2_p = jnp.zeros((hidden_pad, out_pad), jnp.float32).at[:hidden, :out_dim].set(
        params["w2"].astype(jnp.float32))
    b2_p = jnp.zeros((1, out_pad), jnp.float32).at[0, :out_dim].set(
        params["b2"].astype(jnp.float32))

    n_tiles = n_pad // tile_n
    itemsize = jnp.dtype(compute_dtype).itemsize

    cparams = pltpu.CompilerParams(
        dimension_semantics=("parallel", "arbitrary"),
        vmem_limit_bytes=vmem_limit_bytes,
    )

    # ---- Layer 1: HW2 = relu((A @ X) @ W1 + b1) @ W2  --------------------
    l1_flops = (2 * n_pad * n_pad * f_in_pad          # A @ X
                + 2 * n_pad * f_in_pad * hidden_pad   # (AX) @ W1
                + 2 * n_pad * hidden_pad * out_pad)   # H @ W2
    l1_bytes = (n_pad * n_pad * itemsize
                + n_pad * f_in_pad * itemsize
                + f_in_pad * hidden_pad * 4 + hidden_pad * out_pad * 4
                + n_pad * out_pad * itemsize)

    hw2 = pl.pallas_call(
        gcn_layer1_kernel,
        out_shape=jax.ShapeDtypeStruct((n_pad, out_pad), compute_dtype),
        grid=(n_tiles, n_tiles),
        in_specs=[
            pl.BlockSpec((tile_n, tile_n), lambda i, k: (i, k)),         # A_hat
            pl.BlockSpec((tile_n, f_in_pad), lambda i, k: (k, 0)),       # X
            pl.BlockSpec((f_in_pad, hidden_pad), lambda i, k: (0, 0)),   # W1
            pl.BlockSpec((1, hidden_pad), lambda i, k: (0, 0)),          # b1
            pl.BlockSpec((hidden_pad, out_pad), lambda i, k: (0, 0)),    # W2
        ],
        out_specs=pl.BlockSpec((tile_n, out_pad), lambda i, k: (i, 0)),
        scratch_shapes=[pltpu.VMEM((tile_n, f_in_pad), jnp.float32)],
        compiler_params=cparams,
        cost_estimate=pl.CostEstimate(flops=l1_flops, transcendentals=0,
                                      bytes_accessed=l1_bytes),
    )(a_p, x_p, w1_p, b1_p, w2_p)

    # ---- Layer 2: OUT = A @ HW2 + b2  -------------------------------------
    l2_flops = 2 * n_pad * n_pad * out_pad
    l2_bytes = (n_pad * n_pad * itemsize
                + n_pad * out_pad * itemsize
                + out_pad * 4
                + n_pad * out_pad * 4)

    out_p = pl.pallas_call(
        gcn_layer2_kernel,
        out_shape=jax.ShapeDtypeStruct((n_pad, out_pad), jnp.float32),
        grid=(n_tiles, n_tiles),
        in_specs=[
            pl.BlockSpec((tile_n, tile_n), lambda i, k: (i, k)),         # A_hat
            pl.BlockSpec((tile_n, out_pad), lambda i, k: (k, 0)),        # HW2
            pl.BlockSpec((1, out_pad), lambda i, k: (0, 0)),             # b2
        ],
        out_specs=pl.BlockSpec((tile_n, out_pad), lambda i, k: (i, 0)),
        scratch_shapes=[pltpu.VMEM((tile_n, out_pad), jnp.float32)],
        compiler_params=cparams,
        cost_estimate=pl.CostEstimate(flops=l2_flops, transcendentals=0,
                                      bytes_accessed=l2_bytes),
    )(a_p, hw2, b2_p)

    return out_p[:n, :out_dim]


def glorot_uniform(key, fan_in, fan_out):
    limit = jnp.sqrt(6.0 / (fan_in + fan_out))
    return jax.random.uniform(key, (fan_in, fan_out), minval=-limit,
                              maxval=limit, dtype=jnp.float32)


if __name__ == "__main__":
    key = jax.random.PRNGKey(0)
    k_x, k_e, k_w1, k_w2 = jax.random.split(key, 4)

    num_nodes = 16
    input_dim = 8
    hidden_dim = 32
    output_dim = 4
    num_edges = 40

    x = jax.random.normal(k_x, (num_nodes, input_dim), dtype=jnp.float32)
    edge_index = jax.random.randint(k_e, (2, num_edges), 0, num_nodes,
                                    dtype=jnp.int32)

    params = {
        "w1": glorot_uniform(k_w1, input_dim, hidden_dim),
        "b1": jnp.zeros((hidden_dim,), dtype=jnp.float32),
        "w2": glorot_uniform(k_w2, hidden_dim, output_dim),
        "b2": jnp.zeros((output_dim,), dtype=jnp.float32),
    }

    out = stgnn_forward(x, edge_index, params)
    out = jax.block_until_ready(out)
    assert out.shape == (num_nodes, output_dim)

    # Pure-JAX f32 reference of the same forward pass (bf16 streaming tolerance).
    a_ref = build_normalized_adjacency(edge_index, num_nodes)
    h_ref = jnp.maximum(a_ref @ (x @ params["w1"]) + params["b1"], 0.0)
    ref = a_ref @ (h_ref @ params["w2"]) + params["b2"]
    max_err = float(jnp.max(jnp.abs(out - ref)))
    assert max_err < 0.1, f"max abs error too large: {max_err}"

    print("KERNEL_OK")
</pallas_src>

<mosaic_0001>
module attributes {stable_mosaic.version = 11 : i64} {
  func.func @gcn_layer1_kernel(%arg0: i32, %arg1: i32, %arg2: memref<128x128xbf16, #tpu.memory_space<vmem>>, %arg3: memref<128x128xbf16, #tpu.memory_space<vmem>>, %arg4: memref<128x128xf32, #tpu.memory_space<vmem>>, %arg5: memref<1x128xf32, #tpu.memory_space<vmem>>, %arg6: memref<128x128xf32, #tpu.memory_space<vmem>>, %arg7: memref<128x128xbf16, #tpu.memory_space<vmem>>, %arg8: memref<128x128xf32, #tpu.memory_space<vmem>>) attributes {dimension_semantics = [#tpu.dimension_semantics<parallel>, #tpu.dimension_semantics<arbitrary>], iteration_bounds = array<i64: 1, 1>, scalar_prefetch = 0 : i64, scratch_operands = 1 : i64, tpu.core_type = #tpu.core_type<tc>, window_params = [{transform_indices = @transform_0, window_bounds = array<i64: 128, 128>}, {transform_indices = @transform_1, window_bounds = array<i64: 128, 128>}, {pipeline_mode = #tpu.pipeline_mode<synchronous>, transform_indices = @transform_2, window_bounds = array<i64: 128, 128>}, {pipeline_mode = #tpu.pipeline_mode<synchronous>, transform_indices = @transform_3, window_bounds = array<i64: 1, 128>}, {pipeline_mode = #tpu.pipeline_mode<synchronous>, transform_indices = @transform_4, window_bounds = array<i64: 128, 128>}, {transform_indices = @transform_5, window_bounds = array<i64: 128, 128>}]} {
    %c0 = arith.constant 0 : index
    %c0_0 = arith.constant 0 : index
    %0 = vector.load %arg2[%c0, %c0_0] : memref<128x128xbf16, #tpu.memory_space<vmem>>, vector<128x128xbf16>
    %c0_1 = arith.constant 0 : index
    %c0_2 = arith.constant 0 : index
    %1 = vector.load %arg3[%c0_1, %c0_2] : memref<128x128xbf16, #tpu.memory_space<vmem>>, vector<128x128xbf16>
    %cst = arith.constant dense<0.000000e+00> : vector<128x128xf32>
    %2 = tpu.matmul %0, %1, %cst {dimension_numbers = #tpu.dot_dimension_numbers<[1], [0], [0], [1], [0, 0, 1, 1], [], []>} : vector<128x128xbf16>, vector<128x128xbf16>, vector<128x128xf32> -> vector<128x128xf32>
    %c0_i32 = arith.constant 0 : i32
    %3 = arith.cmpi eq, %arg1, %c0_i32 : i32
    %4 = arith.extui %3 : i1 to i32
    %c0_i32_3 = arith.constant 0 : i32
    %5 = arith.cmpi ne, %4, %c0_i32_3 : i32
    scf.if %5 {
      %c0_8 = arith.constant 0 : index
      %c0_9 = arith.constant 0 : index
      %12 = vector.load %arg8[%c0_8, %c0_9] : memref<128x128xf32, #tpu.memory_space<vmem>>, vector<128x128xf32>
      tpu.vector_store %arg8[%c0_8, %c0_9], %2 {strides = array<i32>} : memref<128x128xf32, #tpu.memory_space<vmem>>, vector<128x128xf32>,
    } else {
    }
    %c0_i32_4 = arith.constant 0 : i32
    %6 = arith.cmpi sgt, %arg1, %c0_i32_4 : i32
    %7 = arith.extui %6 : i1 to i32
    %c0_i32_5 = arith.constant 0 : i32
    %8 = arith.cmpi ne, %7, %c0_i32_5 : i32
    scf.if %8 {
      %c0_8 = arith.constant 0 : index
      %c0_9 = arith.constant 0 : index
      %12 = vector.load %arg8[%c0_8, %c0_9] : memref<128x128xf32, #tpu.memory_space<vmem>>, vector<128x128xf32>
      %13 = arith.addf %12, %2 : vector<128x128xf32>
      %c0_10 = arith.constant 0 : index
      %c0_11 = arith.constant 0 : index
      %14 = vector.load %arg8[%c0_10, %c0_11] : memref<128x128xf32, #tpu.memory_space<vmem>>, vector<128x128xf32>
      tpu.vector_store %arg8[%c0_10, %c0_11], %13 {strides = array<i32>} : memref<128x128xf32, #tpu.memory_space<vmem>>, vector<128x128xf32>,
    } else {
    }
    %c0_i32_6 = arith.constant 0 : i32
    %9 = arith.cmpi eq, %arg1, %c0_i32_6 : i32
    %10 = arith.extui %9 : i1 to i32
    %c0_i32_7 = arith.constant 0 : i32
    %11 = arith.cmpi ne, %10, %c0_i32_7 : i32
    scf.if %11 {
      %c0_8 = arith.constant 0 : index
      %c0_9 = arith.constant 0 : index
      %12 = vector.load %arg8[%c0_8, %c0_9] : memref<128x128xf32, #tpu.memory_space<vmem>>, vector<128x128xf32>
      %c0_10 = arith.constant 0 : index
      %c0_11 = arith.constant 0 : index
      %13 = vector.load %arg4[%c0_10, %c0_11] : memref<128x128xf32, #tpu.memory_space<vmem>>, vector<128x128xf32>
      %cst_12 = arith.constant dense<0.000000e+00> : vector<128x128xf32>
      %14 = tpu.matmul %12, %13, %cst_12 {dimension_numbers = #tpu.dot_dimension_numbers<[1], [0], [0], [1], [0, 0, 1, 1], [], []>} : vector<128x128xf32>, vector<128x128xf32>, vector<128x128xf32> -> vector<128x128xf32>
      %c0_13 = arith.constant 0 : index
      %c0_14 = arith.constant 0 : index
      %15 = vector.load %arg5[%c0_13, %c0_14] : memref<1x128xf32, #tpu.memory_space<vmem>>, vector<1x128xf32>
      %16 = vector.broadcast %15 : vector<1x128xf32> to vector<128x128xf32>
      %17 = arith.addf %14, %16 : vector<128x128xf32>
      %cst_15 = arith.constant 0.000000e+00 : f32
      %18 = vector.broadcast %cst_15 : f32 to vector<128x128xf32>
      %19 = arith.maximumf %17, %18 : vector<128x128xf32>
      %c0_16 = arith.constant 0 : index
      %c0_17 = arith.constant 0 : index
      %20 = vector.load %arg6[%c0_16, %c0_17] : memref<128x128xf32, #tpu.memory_space<vmem>>, vector<128x128xf32>
      %cst_18 = arith.constant dense<0.000000e+00> : vector<128x128xf32>
      %21 = tpu.matmul %19, %20, %cst_18 {dimension_numbers = #tpu.dot_dimension_numbers<[1], [0], [0], [1], [0, 0, 1, 1], [], []>} : vector<128x128xf32>, vector<128x128xf32>, vector<128x128xf32> -> vector<128x128xf32>
      %22 = arith.truncf %21 : vector<128x128xf32> to vector<128x128xbf16>
      %c0_19 = arith.constant 0 : index
      %c0_20 = arith.constant 0 : index
      %23 = vector.load %arg7[%c0_19, %c0_20] : memref<128x128xbf16, #tpu.memory_space<vmem>>, vector<128x128xbf16>
      tpu.vector_store %arg7[%c0_19, %c0_20], %22 {strides = array<i32>} : memref<128x128xbf16, #tpu.memory_space<vmem>>, vector<128x128xbf16>,
    } else {
    }
    return
  }
  func.func @transform_0(%arg0: i32, %arg1: i32) -> (i32, i32) {
    %c0_i32 = arith.constant 0 : i32
    return %arg0, %arg1 : i32, i32
  }
  func.func @transform_1(%arg0: i32, %arg1: i32) -> (i32, i32) {
    %c0_i32 = arith.constant 0 : i32
    %c0_i32_0 = arith.constant 0 : i32
    return %arg1, %c0_i32 : i32, i32
  }
  func.func @transform_2(%arg0: i32, %arg1: i32) -> (i32, i32) {
    %c0_i32 = arith.constant 0 : i32
    %c0_i32_0 = arith.constant 0 : i32
    %c0_i32_1 = arith.constant 0 : i32
    return %c0_i32, %c0_i32_0 : i32, i32
  }
  func.func @transform_3(%arg0: i32, %arg1: i32) -> (i32, i32) {
    %c0_i32 = arith.constant 0 : i32
    %c0_i32_0 = arith.constant 0 : i32
    %c0_i32_1 = arith.constant 0 : i32
    return %c0_i32, %c0_i32_0 : i32, i32
  }
  func.func @transform_4(%arg0: i32, %arg1: i32) -> (i32, i32) {
    %c0_i32 = arith.constant 0 : i32
    %c0_i32_0 = arith.constant 0 : i32
    %c0_i32_1 = arith.constant 0 : i32
    return %c0_i32, %c0_i32_0 : i32, i32
  }
  func.func @transform_5(%arg0: i32, %arg1: i32) -> (i32, i32) {
    %c0_i32 = arith.constant 0 : i32
    %c0_i32_0 = arith.constant 0 : i32
    return %arg0, %c0_i32 : i32, i32
  }
}

</mosaic_0001>

<llo_original>
// kernel: tpu_custom_call.1
$region0: #{tpu_custom_call.1}
  #allocation0 [shape = 'u32[]', space=smem, size = 0x4, offset = 0x4, fixed_abs, tag = 'smem constant byte address 0x4 - core index']
  #allocation1 [shape = 'u32[144,128]{1,0:T(1,128)}', space=vmem, size = 0x12000, scoped, tag = 'internal scratch']
  #allocation2 [shape = 'f32[128,128]{1,0:T(8,128)}', space=vmem, size = 0x10000, scoped, tag = 'scratch operand']
  %s0 = inlined_call_operand.hbm [shape: bf16[128,128], index: 0, kind: input, shape index: {}]
  %s1 = inlined_call_operand.hbm [shape: bf16[128,128], index: 1, kind: input, shape index: {}]
  %s2 = inlined_call_operand.hbm [shape: f32[128,128], index: 2, kind: input, shape index: {}]
  %s3 = inlined_call_operand.vmem [shape: f32[1,128], index: 3, kind: input, shape index: {}]
  %s4 = inlined_call_operand.hbm [shape: f32[128,128], index: 4, kind: input, shape index: {}]
  %s5 = inlined_call_operand.hbm [shape: bf16[128,128], index: 5, kind: output, shape index: {}]
  %s6 = sld [smem:[#allocation0]]
  $region58: #{tpu_custom_call.1} parent=0
    _
  %s8 = ssub.s32 1, %s6
  %s9 = scalar_select 0, %s8, %s6
  $region1: #{tpu_custom_call.1} parent=0
    #allocation3 [shape = 'u8[32768]{0}', space=vmem, size = 0x8000, scoped, tag = 'input window, operand 0, single buffered']
    #allocation4 [shape = 's32[1]{0}', space=sflag, size = 0x4, scoped, tag = 'scoped memory for tpu_custom_call.1']
    #allocation5 [shape = 's32[1]{0}', space=sflag, size = 0x4, scoped, tag = 'scoped memory for tpu_custom_call.1']
    #allocation6 [shape = 'u8[32768]{0}', space=vmem, size = 0x8000, scoped, tag = 'input window, operand 1, single buffered']
    #allocation7 [shape = 's32[1]{0}', space=sflag, size = 0x4, scoped, tag = 'scoped memory for tpu_custom_call.1']
    #allocation8 [shape = 'u8[65536]{0}', space=vmem, size = 0x10000, scoped, tag = 'input window, operand 2, single buffered']
    #allocation9 [shape = 'u8[65536]{0}', space=vmem, size = 0x10000, scoped, tag = 'input window, operand 4, single buffered']
    #allocation10 [shape = 's32[1]{0}', space=sflag, size = 0x4, scoped, tag = 'scoped memory for tpu_custom_call.1']
    #allocation11 [shape = 'u8[32768]{0}', space=vmem, size = 0x8000, scoped, tag = 'output window, operand 0, single buffered']
    %10 = vsyncpa [#allocation4], 0
    %11 = vsyncpa [#allocation7], 0
    %12 = vsyncpa [#allocation10], 0
    %13 = vsyncpa [#allocation5], 0
    // Predicated region
    $region2: #{tpu_custom_call.1} parent=1 // pred_check
      _
    $region3: #{tpu_custom_call.1} parent=1 // pred_check_branch
      %15 = sbr.rel (0) target = $region5
    $region4: #{tpu_custom_call.1} parent=1 // pred_region
      %s17 = ssub.s32 1024, 1024
      %18 = vsyncadd [#allocation4], %s17
      %s19 = sshll.u32 [#allocation3], 4
      %s20 = int_to_ptr.vmem [resolvable:$true] %s19
      %25 = dma.hbm_to_vmem [thread:$0]  %s0, 1024, %s20, [#allocation4], 64, 64, 4
    $region5: #{tpu_custom_call.1} parent=1 // pred_fallthru
      _
    // Predicated region
    $region6: #{tpu_custom_call.1} parent=1 // pred_check
      _
    $region7: #{tpu_custom_call.1} parent=1 // pred_check_branch
      %27 = sbr.rel (0) target = $region9
    $region8: #{tpu_custom_call.1} parent=1 // pred_region
      %s29 = ssub.s32 1024, 1024
      %30 = vsyncadd [#allocation7], %s29
      %s31 = sshll.u32 [#allocation6], 4
      %s32 = int_to_ptr.vmem [resolvable:$true] %s31
      %37 = dma.hbm_to_vmem [thread:$0]  %s1, 1024, %s32, [#allocation7], 64, 64, 4
    $region9: #{tpu_custom_call.1} parent=1 // pred_fallthru
      _
    // Predicated region
    $region10: #{tpu_custom_call.1} parent=1 // pred_check
      _
    $region11: #{tpu_custom_call.1} parent=1 // pred_check_branch
      %39 = sbr.rel (0) target = $region13
    $region12: #{tpu_custom_call.1} parent=1 // pred_region
      %s41 = ssub.s32 2048, 2048
      %42 = vsyncadd [#allocation7], %s41
      %s43 = sshll.u32 [#allocation8], 4
      %s44 = int_to_ptr.vmem [resolvable:$true] %s43
      %49 = dma.hbm_to_vmem [thread:$0]  %s2, 2048, %s44, [#allocation7], 128, 128, 8
    $region13: #{tpu_custom_call.1} parent=1 // pred_fallthru
      _
    // Predicated region
    $region14: #{tpu_custom_call.1} parent=1 // pred_check
      _
    $region15: #{tpu_custom_call.1} parent=1 // pred_check_branch
      %51 = sbr.rel (0) target = $region17
    $region16: #{tpu_custom_call.1} parent=1 // pred_region
      _
    $region17: #{tpu_custom_call.1} parent=1 // pred_fallthru
      _
    // Predicated region
    $region18: #{tpu_custom_call.1} parent=1 // pred_check
      _
    $region19: #{tpu_custom_call.1} parent=1 // pred_check_branch
      %53 = sbr.rel (0) target = $region21
    $region20: #{tpu_custom_call.1} parent=1 // pred_region
      %s55 = ssub.s32 2048, 2048
      %56 = vsyncadd [#allocation10], %s55
      %s57 = sshll.u32 [#allocation9], 4
      %s58 = int_to_ptr.vmem [resolvable:$true] %s57
      %63 = dma.hbm_to_vmem [thread:$0]  %s4, 2048, %s58, [#allocation10], 128, 128, 8
    $region21: #{tpu_custom_call.1} parent=1 // pred_fallthru
      _
    // Predicated region
    $region22: #{tpu_custom_call.1} parent=1 // pred_check
      _
    $region23: #{tpu_custom_call.1} parent=1 // pred_check_branch
      %65 = sbr.rel (0) target = $region25
    $region24: #{tpu_custom_call.1} parent=1 // pred_region
      %66 = dma.done [#allocation4], 1024
    $region25: #{tpu_custom_call.1} parent=1 // pred_fallthru
      _
    // Predicated region
    $region26: #{tpu_custom_call.1} parent=1 // pred_check
      _
    $region27: #{tpu_custom_call.1} parent=1 // pred_check_branch
      %68 = sbr.rel (0) target = $region29
    $region28: #{tpu_custom_call.1} parent=1 // pred_region
      %69 = dma.done [#allocation7], 1024
    $region29: #{tpu_custom_call.1} parent=1 // pred_fallthru
      _
    // Predicated region
    $region30: #{tpu_custom_call.1} parent=1 // pred_check
      _
    $region31: #{tpu_custom_call.1} parent=1 // pred_check_branch
      %71 = sbr.rel (0) target = $region33
    $region32: #{tpu_custom_call.1} parent=1 // pred_region
      %72 = dma.done [#allocation7], 2048
    $region33: #{tpu_custom_call.1} parent=1 // pred_fallthru
      _
    // Predicated region
    $region34: #{tpu_custom_call.1} parent=1 // pred_check
      _
    $region35: #{tpu_custom_call.1} parent=1 // pred_check_branch
      %74 = sbr.rel (0) target = $region37
    $region36: #{tpu_custom_call.1} parent=1 // pred_region
      %75 = dma.done [#allocation10], 2048
    $region37: #{tpu_custom_call.1} parent=1 // pred_fallthru
      _
    %v77 = vld [vmem:[#allocation3] sm:$0xf]
    %v78 = vld [vmem:[#allocation3 + $0x4] sm:$0xf]
    %v79 = vld [vmem:[#allocation3 + $0x8] sm:$0xf]
    %v80 = vld [vmem:[#allocation3 + $0xc] sm:$0xf]
    %v81 = vld [vmem:[#allocation3 + $0x10] sm:$0xf]
    %v82 = vld [vmem:[#allocation3 + $0x14] sm:$0xf]
    %v83 = vld [vmem:[#allocation3 + $0x18] sm:$0xf]
    %v84 = vld [vmem:[#allocation3 + $0x1c] sm:$0xf]
    %v85 = vld [vmem:[#allocation3 + $0x20] sm:$0xf]
    %v86 = vld [vmem:[#allocation3 + $0x24] sm:$0xf]
    %v87 = vld [vmem:[#allocation3 + $0x28] sm:$0xf]
    %v88 = vld [vmem:[#allocation3 + $0x2c] sm:$0xf]
    %v89 = vld [vmem:[#allocation3 + $0x30] sm:$0xf]
    %v90 = vld [vmem:[#allocation3 + $0x34] sm:$0xf]
    %v91 = vld [vmem:[#allocation3 + $0x38] sm:$0xf]
    %v92 = vld [vmem:[#allocation3 + $0x3c] sm:$0xf]
    %v93 = vld [vmem:[#allocation6] sm:$0xf]
    %v94 = vld [vmem:[#allocation6 + $0x4] sm:$0xf]
    %v95 = vld [vmem:[#allocation6 + $0x8] sm:$0xf]
    %v96 = vld [vmem:[#allocation6 + $0xc] sm:$0xf]
    %v97 = vld [vmem:[#allocation6 + $0x10] sm:$0xf]
    %v98 = vld [vmem:[#allocation6 + $0x14] sm:$0xf]
    %v99 = vld [vmem:[#allocation6 + $0x18] sm:$0xf]
    %v100 = vld [vmem:[#allocation6 + $0x1c] sm:$0xf]
    %v101 = vld [vmem:[#allocation6 + $0x20] sm:$0xf]
    %v102 = vld [vmem:[#allocation6 + $0x24] sm:$0xf]
    %v103 = vld [vmem:[#allocation6 + $0x28] sm:$0xf]
    %v104 = vld [vmem:[#allocation6 + $0x2c] sm:$0xf]
    %v105 = vld [vmem:[#allocation6 + $0x30] sm:$0xf]
    %v106 = vld [vmem:[#allocation6 + $0x34] sm:$0xf]
    %v107 = vld [vmem:[#allocation6 + $0x38] sm:$0xf]
    %v108 = vld [vmem:[#allocation6 + $0x3c] sm:$0xf]
    %v125 = vunpack.c.l.b16 %v77
    %v126 = vunpack.c.l.b16 %v78
    %v127 = vunpack.c.l.b16 %v79
    %v128 = vunpack.c.l.b16 %v80
    %v129 = vunpack.c.l.b16 %v81
    %v130 = vunpack.c.l.b16 %v82
    %v131 = vunpack.c.l.b16 %v83
    %v132 = vunpack.c.l.b16 %v84
    %v133 = vunpack.c.l.b16 %v85
    %v134 = vunpack.c.l.b16 %v86
    %v135 = vunpack.c.l.b16 %v87
    %v136 = vunpack.c.l.b16 %v88
    %v137 = vunpack.c.l.b16 %v89
    %v138 = vunpack.c.l.b16 %v90
    %v139 = vunpack.c.l.b16 %v91
    %v140 = vunpack.c.l.b16 %v92
    %v141 = vpack.c.b16 %v126, %v125
    %v142 = vpack.c.b16 %v128, %v127
    %v143 = vpack.c.b16 %v130, %v129
    %v144 = vpack.c.b16 %v132, %v131
    %v145 = vpack.c.b16 %v134, %v133
    %v146 = vpack.c.b16 %v136, %v135
    %v147 = vpack.c.b16 %v138, %v137
    %v148 = vpack.c.b16 %v140, %v139
    %v173 = vunpack.c.l.b16 %v93
    %v174 = vunpack.c.l.b16 %v94
    %v175 = vunpack.c.l.b16 %v95
    %v176 = vunpack.c.l.b16 %v96
    %v177 = vunpack.c.l.b16 %v97
    %v178 = vunpack.c.l.b16 %v98
    %v179 = vunpack.c.l.b16 %v99
    %v180 = vunpack.c.l.b16 %v100
    %v181 = vunpack.c.l.b16 %v101
    %v182 = vunpack.c.l.b16 %v102
    %v183 = vunpack.c.l.b16 %v103
    %v184 = vunpack.c.l.b16 %v104
    %v185 = vunpack.c.l.b16 %v105
    %v186 = vunpack.c.l.b16 %v106
    %v187 = vunpack.c.l.b16 %v107
    %v188 = vunpack.c.l.b16 %v108
    %v189 = vpack.c.b16 %v174, %v173
    %v190 = vpack.c.b16 %v176, %v175
    %v191 = vpack.c.b16 %v178, %v177
    %v192 = vpack.c.b16 %v180, %v179
    %v193 = vpack.c.b16 %v182, %v181
    %v194 = vpack.c.b16 %v184, %v183
    %v195 = vpack.c.b16 %v186, %v185
    %v196 = vpack.c.b16 %v188, %v187
    %205 = vmatprep.subr.bf16.mxu0 0
    %206 = vmatpush1.bf16.msra.mxu0 %v196
    %207 = vmatprep.subr.bf16.mxu0 0
    %208 = vmatpush1.bf16.msra.mxu0 %v195
    %209 = vmatprep.subr.bf16.mxu0 0
    %210 = vmatpush1.bf16.msra.mxu0 %v194
    %211 = vmatprep.subr.bf16.mxu0 0
    %212 = vmatpush1.bf16.msra.mxu0 %v193
    %213 = vmatprep.subr.bf16.mxu0 0
    %214 = vmatpush1.bf16.msra.mxu0 %v192
    %215 = vmatprep.subr.bf16.mxu0 0
    %216 = vmatpush1.bf16.msra.mxu0 %v191
    %217 = vmatprep.subr.bf16.mxu0 0
    %218 = vmatpush1.bf16.msra.mxu0 %v190
    %219 = vmatprep.subr.bf16.mxu0 0
    %220 = vmatpush1.bf16.msra.mxu0 %v189
    %221 = vmatprep.subr.bf16.mxu0 0
    %222 = vmatpush2.bf16.msra.mxu0 0
    %223 = vmatprep.subr.bf16.mxu0 0
    %224 = vmatpush2.bf16.msra.mxu0 0
    %225 = vmatprep.subr.bf16.mxu0 0
    %226 = vmatpush2.bf16.msra.mxu0 0
    %227 = vmatprep.subr.bf16.mxu0 0
    %228 = vmatpush2.bf16.msra.mxu0 0
    %229 = vmatprep.subr.bf16.mxu0 0
    %230 = vmatpush2.bf16.msra.mxu0 0
    %231 = vmatprep.subr.bf16.mxu0 0
    %232 = vmatpush2.bf16.msra.mxu0 0
    %233 = vmatprep.subr.bf16.mxu0 0
    %234 = vmatpush2.bf16.msra.mxu0 0
    %235 = vmatprep.subr.bf16.mxu0 0
    %236 = vmatpush2.bf16.msra.mxu0 0
    %237 = vmatprep.mubr.bf16.mxu0 0
    %238 = vmatmul.mubr.bf16.gmra.mxu0 %v141
    %v239 = vpop.f32.mrf.mxu0
    %v240 = vadd.f32 0.0, %v239
    %v241 = vpop.f32.mrf.mxu0
    %v242 = vpop.f32.mrf.mxu0
    %v243 = vadd.f32 0.0, %v242
    %v244 = vpop.f32.mrf.mxu0
    %245 = vmatprep.mubr.bf16.mxu0 0
    %246 = vmatmul.mubr.bf16.gmra.mxu0 %v142
    %v247 = vpop.f32.mrf.mxu0
    %v248 = vadd.f32 0.0, %v247
    %v249 = vpop.f32.mrf.mxu0
    %v250 = vpop.f32.mrf.mxu0
    %v251 = vadd.f32 0.0, %v250
    %v252 = vpop.f32.mrf.mxu0
    %253 = vmatprep.mubr.bf16.mxu0 0
    %254 = vmatmul.mubr.bf16.gmra.mxu0 %v143
    %v255 = vpop.f32.mrf.mxu0
    %v256 = vadd.f32 0.0, %v255
    %v257 = vpop.f32.mrf.mxu0
    %v258 = vpop.f32.mrf.mxu0
    %v259 = vadd.f32 0.0, %v258
    %v260 = vpop.f32.mrf.mxu0
    %261 = vmatprep.mubr.bf16.mxu0 0
    %262 = vmatmul.mubr.bf16.gmra.mxu0 %v144
    %v263 = vpop.f32.mrf.mxu0
    %v264 = vadd.f32 0.0, %v263
    %v265 = vpop.f32.mrf.mxu0
    %v266 = vpop.f32.mrf.mxu0
    %v267 = vadd.f32 0.0, %v266
    %v268 = vpop.f32.mrf.mxu0
    %269 = vmatprep.mubr.bf16.mxu0 0
    %270 = vmatmul.mubr.bf16.gmra.mxu0 %v145
    %v271 = vpop.f32.mrf.mxu0
    %v272 = vadd.f32 0.0, %v271
    %v273 = vpop.f32.mrf.mxu0
    %v274 = vpop.f32.mrf.mxu0
    %v275 = vadd.f32 0.0, %v274
    %v276 = vpop.f32.mrf.mxu0
    %277 = vmatprep.mubr.bf16.mxu0 0
    %278 = vmatmul.mubr.bf16.gmra.mxu0 %v146
    %v279 = vpop.f32.mrf.mxu0
    %v280 = vadd.f32 0.0, %v279
    %v281 = vpop.f32.mrf.mxu0
    %v282 = vpop.f32.mrf.mxu0
    %v283 = vadd.f32 0.0, %v282
    %v284 = vpop.f32.mrf.mxu0
    %285 = vmatprep.mubr.bf16.mxu0 0
    %286 = vmatmul.mubr.bf16.gmra.mxu0 %v147
    %v287 = vpop.f32.mrf.mxu0
    %v288 = vadd.f32 0.0, %v287
    %v289 = vpop.f32.mrf.mxu0
    %v290 = vpop.f32.mrf.mxu0
    %v291 = vadd.f32 0.0, %v290
    %v292 = vpop.f32.mrf.mxu0
    %293 = vmatprep.mubr.bf16.mxu0 0
    %294 = vmatmul.mubr.bf16.gmra.mxu0 %v148
    %v295 = vpop.f32.mrf.mxu0
    %v296 = vadd.f32 0.0, %v295
    %v297 = vpop.f32.mrf.mxu0
    %v298 = vpop.f32.mrf.mxu0
    %v299 = vadd.f32 0.0, %v298
    %v300 = vpop.f32.mrf.mxu0
    %301 = vdwg.mxu0
    %p302 = scmp.eq.s32.totalorder 0, 0
    // Predicated region
    $region38: #{tpu_custom_call.1} parent=1 // pred_check
      %p303 = pneg %p302
    $region39: #{tpu_custom_call.1} parent=1 // pred_check_branch
      %305 = sbr.rel (%p303) target = $region41
    $region40: #{tpu_custom_call.1} parent=1 // pred_region
      %306 = vst [vmem:[#allocation2] sm:$0xff] %v240
      %307 = vst [vmem:[#allocation2 + $0x8] sm:$0xff] %v243
      %308 = vst [vmem:[#allocation2 + $0x10] sm:$0xff] %v248
      %309 = vst [vmem:[#allocation2 + $0x18] sm:$0xff] %v251
      %310 = vst [vmem:[#allocation2 + $0x20] sm:$0xff] %v256
      %311 = vst [vmem:[#allocation2 + $0x28] sm:$0xff] %v259
      %312 = vst [vmem:[#allocation2 + $0x30] sm:$0xff] %v264
      %313 = vst [vmem:[#allocation2 + $0x38] sm:$0xff] %v267
      %314 = vst [vmem:[#allocation2 + $0x40] sm:$0xff] %v272
      %315 = vst [vmem:[#allocation2 + $0x48] sm:$0xff] %v275
      %316 = vst [vmem:[#allocation2 + $0x50] sm:$0xff] %v280
      %317 = vst [vmem:[#allocation2 + $0x58] sm:$0xff] %v283
      %318 = vst [vmem:[#allocation2 + $0x60] sm:$0xff] %v288
      %319 = vst [vmem:[#allocation2 + $0x68] sm:$0xff] %v291
      %320 = vst [vmem:[#allocation2 + $0x70] sm:$0xff] %v296
      %321 = vst [vmem:[#allocation2 + $0x78] sm:$0xff] %v299
    $region41: #{tpu_custom_call.1} parent=1 // pred_fallthru
      _
    %p322 = scmp.gt.s32.totalorder 0, 0
    // Predicated region
    $region42: #{tpu_custom_call.1} parent=1 // pred_check
      %p323 = pneg %p322
    $region43: #{tpu_custom_call.1} parent=1 // pred_check_branch
      %325 = sbr.rel (%p323) target = $region45
    $region44: #{tpu_custom_call.1} parent=1 // pred_region
      %v326 = vld [vmem:[#allocation2] sm:$0xff]
      %v327 = vld [vmem:[#allocation2 + $0x8] sm:$0xff]
      %v328 = vld [vmem:[#allocation2 + $0x10] sm:$0xff]
      %v329 = vld [vmem:[#allocation2 + $0x18] sm:$0xff]
      %v330 = vld [vmem:[#allocation2 + $0x20] sm:$0xff]
      %v331 = vld [vmem:[#allocation2 + $0x28] sm:$0xff]
      %v332 = vld [vmem:[#allocation2 + $0x30] sm:$0xff]
      %v333 = vld [vmem:[#allocation2 + $0x38] sm:$0xff]
      %v334 = vld [vmem:[#allocation2 + $0x40] sm:$0xff]
      %v335 = vld [vmem:[#allocation2 + $0x48] sm:$0xff]
      %v336 = vld [vmem:[#allocation2 + $0x50] sm:$0xff]
      %v337 = vld [vmem:[#allocation2 + $0x58] sm:$0xff]
      %v338 = vld [vmem:[#allocation2 + $0x60] sm:$0xff]
      %v339 = vld [vmem:[#allocation2 + $0x68] sm:$0xff]
      %v340 = vld [vmem:[#allocation2 + $0x70] sm:$0xff]
      %v341 = vld [vmem:[#allocation2 + $0x78] sm:$0xff]
      %v342 = vadd.f32 %v326, %v240
      %v343 = vadd.f32 %v327, %v243
      %v344 = vadd.f32 %v328, %v248
      %v345 = vadd.f32 %v329, %v251
      %v346 = vadd.f32 %v330, %v256
      %v347 = vadd.f32 %v331, %v259
      %v348 = vadd.f32 %v332, %v264
      %v349 = vadd.f32 %v333, %v267
      %v350 = vadd.f32 %v334, %v272
      %v351 = vadd.f32 %v335, %v275
      %v352 = vadd.f32 %v336, %v280
      %v353 = vadd.f32 %v337, %v283
      %v354 = vadd.f32 %v338, %v288
      %v355 = vadd.f32 %v339, %v291
      %v356 = vadd.f32 %v340, %v296
      %v357 = vadd.f32 %v341, %v299
      %358 = vst [vmem:[#allocation2] sm:$0xff] %v342
      %359 = vst [vmem:[#allocation2 + $0x8] sm:$0xff] %v343
      %360 = vst [vmem:[#allocation2 + $0x10] sm:$0xff] %v344
      %361 = vst [vmem:[#allocation2 + $0x18] sm:$0xff] %v345
      %362 = vst [vmem:[#allocation2 + $0x20] sm:$0xff] %v346
      %363 = vst [vmem:[#allocation2 + $0x28] sm:$0xff] %v347
      %364 = vst [vmem:[#allocation2 + $0x30] sm:$0xff] %v348
      %365 = vst [vmem:[#allocation2 + $0x38] sm:$0xff] %v349
      %366 = vst [vmem:[#allocation2 + $0x40] sm:$0xff] %v350
      %367 = vst [vmem:[#allocation2 + $0x48] sm:$0xff] %v351
      %368 = vst [vmem:[#allocation2 + $0x50] sm:$0xff] %v352
      %369 = vst [vmem:[#allocation2 + $0x58] sm:$0xff] %v353
      %370 = vst [vmem:[#allocation2 + $0x60] sm:$0xff] %v354
      %371 = vst [vmem:[#allocation2 + $0x68] sm:$0xff] %v355
      %372 = vst [vmem:[#allocation2 + $0x70] sm:$0xff] %v356
      %373 = vst [vmem:[#allocation2 + $0x78] sm:$0xff] %v357
    $region45: #{tpu_custom_call.1} parent=1 // pred_fallthru
      _
    // Predicated region
    $region46: #{tpu_custom_call.1} parent=1 // pred_check
      %p374 = pneg %p302
    $region47: #{tpu_custom_call.1} parent=1 // pred_check_branch
      %376 = sbr.rel (%p374) target = $region49
    $region48: #{tpu_custom_call.1} parent=1 // pred_region
      %v377 = vld [vmem:[#allocation2] sm:$0xff]
      %v378 = vld [vmem:[#allocation2 + $0x8] sm:$0xff]
      %v379 = vld [vmem:[#allocation2 + $0x10] sm:$0xff]
      %v380 = vld [vmem:[#allocation2 + $0x18] sm:$0xff]
      %v381 = vld [vmem:[#allocation2 + $0x20] sm:$0xff]
      %v382 = vld [vmem:[#allocation2 + $0x28] sm:$0xff]
      %v383 = vld [vmem:[#allocation2 + $0x30] sm:$0xff]
      %v384 = vld [vmem:[#allocation2 + $0x38] sm:$0xff]
      %v385 = vld [vmem:[#allocation2 + $0x40] sm:$0xff]
      %v386 = vld [vmem:[#allocation2 + $0x48] sm:$0xff]
      %v387 = vld [vmem:[#allocation2 + $0x50] sm:$0xff]
      %v388 = vld [vmem:[#allocation2 + $0x58] sm:$0xff]
      %v389 = vld [vmem:[#allocation2 + $0x60] sm:$0xff]
      %v390 = vld [vmem:[#allocation2 + $0x68] sm:$0xff]
      %v391 = vld [vmem:[#allocation2 + $0x70] sm:$0xff]
      %v392 = vld [vmem:[#allocation2 + $0x78] sm:$0xff]
      %v393 = vld [vmem:[#allocation8] sm:$0xff]
      %v394 = vld [vmem:[#allocation8 + $0x8] sm:$0xff]
      %v395 = vld [vmem:[#allocation8 + $0x10] sm:$0xff]
      %v396 = vld [vmem:[#allocation8 + $0x18] sm:$0xff]
      %v397 = vld [vmem:[#allocation8 + $0x20] sm:$0xff]
      %v398 = vld [vmem:[#allocation8 + $0x28] sm:$0xff]
      %v399 = vld [vmem:[#allocation8 + $0x30] sm:$0xff]
      %v400 = vld [vmem:[#allocation8 + $0x38] sm:$0xff]
      %v401 = vld [vmem:[#allocation8 + $0x40] sm:$0xff]
      %v402 = vld [vmem:[#allocation8 + $0x48] sm:$0xff]
      %v403 = vld [vmem:[#allocation8 + $0x50] sm:$0xff]
      %v404 = vld [vmem:[#allocation8 + $0x58] sm:$0xff]
      %v405 = vld [vmem:[#allocation8 + $0x60] sm:$0xff]
      %v406 = vld [vmem:[#allocation8 + $0x68] sm:$0xff]
      %v407 = vld [vmem:[#allocation8 + $0x70] sm:$0xff]
      %v408 = vld [vmem:[#allocation8 + $0x78] sm:$0xff]
      %v409 = vld [vmem:[%s3] sm:$0x1]
      %v411 = vlaneseq
      %v412 = vshrl.u32 %v411, 7
      %v413 = vsub.s32 0, %v412
      %v414 = vrot.slane %v409, %v413
      %416 = vmatprep.subr.mxu0 0.0
      %417 = vmatpush1.msra.mxu0 %v408
      %418 = vmatprep.subr.mxu0 0.0
      %419 = vmatpush1.msra.mxu0 %v407
      %420 = vmatprep.subr.mxu0 0.0
      %421 = vmatpush1.msra.mxu0 %v406
      %422 = vmatprep.subr.mxu0 0.0
      %423 = vmatpush1.msra.mxu0 %v405
      %424 = vmatprep.subr.mxu0 0.0
      %425 = vmatpush1.msra.mxu0 %v404
      %426 = vmatprep.subr.mxu0 0.0
      %427 = vmatpush1.msra.mxu0 %v403
      %428 = vmatprep.subr.mxu0 0.0
      %429 = vmatpush1.msra.mxu0 %v402
      %430 = vmatprep.subr.mxu0 0.0
      %431 = vmatpush1.msra.mxu0 %v401
      %432 = vmatprep.subr.mxu0 0.0
      %433 = vmatpush1.msra.mxu0 %v400
      %434 = vmatprep.subr.mxu0 0.0
      %435 = vmatpush1.msra.mxu0 %v399
      %436 = vmatprep.subr.mxu0 0.0
      %437 = vmatpush1.msra.mxu0 %v398
      %438 = vmatprep.subr.mxu0 0.0
      %439 = vmatpush1.msra.mxu0 %v397
      %440 = vmatprep.subr.mxu0 0.0
      %441 = vmatpush1.msra.mxu0 %v396
      %442 = vmatprep.subr.mxu0 0.0
      %443 = vmatpush1.msra.mxu0 %v395
      %444 = vmatprep.subr.mxu0 0.0
      %445 = vmatpush1.msra.mxu0 %v394
      %446 = vmatprep.subr.mxu0 0.0
      %447 = vmatpush1.msra.mxu0 %v393
      %448 = vmatprep.subr.mxu0 0.0
      %449 = vmatpush2.msra.mxu0 0.0
      %450 = vmatprep.subr.mxu0 0.0
      %451 = vmatpush2.msra.mxu0 0.0
      %452 = vmatprep.subr.mxu0 0.0
      %453 = vmatpush2.msra.mxu0 0.0
      %454 = vmatprep.subr.mxu0 0.0
      %455 = vmatpush2.msra.mxu0 0.0
      %456 = vmatprep.subr.mxu0 0.0
      %457 = vmatpush2.msra.mxu0 0.0
      %458 = vmatprep.subr.mxu0 0.0
      %459 = vmatpush2.msra.mxu0 0.0
      %460 = vmatprep.subr.mxu0 0.0
      %461 = vmatpush2.msra.mxu0 0.0
      %462 = vmatprep.subr.mxu0 0.0
      %463 = vmatpush2.msra.mxu0 0.0
      %464 = vmatprep.subr.mxu0 0.0
      %465 = vmatpush2.msra.mxu0 0.0
      %466 = vmatprep.subr.mxu0 0.0
      %467 = vmatpush2.msra.mxu0 0.0
      %468 = vmatprep.subr.mxu0 0.0
      %469 = vmatpush2.msra.mxu0 0.0
      %470 = vmatprep.subr.mxu0 0.0
      %471 = vmatpush2.msra.mxu0 0.0
      %472 = vmatprep.subr.mxu0 0.0
      %473 = vmatpush2.msra.mxu0 0.0
      %474 = vmatprep.subr.mxu0 0.0
      %475 = vmatpush2.msra.mxu0 0.0
      %476 = vmatprep.subr.mxu0 0.0
      %477 = vmatpush2.msra.mxu0 0.0
      %478 = vmatprep.subr.mxu0 0.0
      %479 = vmatpush2.msra.mxu0 0.0
      %480 = vmatprep.mubr.f32.mxu0 0.0
      %481 = vmatmul.mubr.f32.gmra.mxu0 %v377
      %v482 = vpop.f32.mrf.mxu0
      %v483 = vadd.f32 %v414, %v482
      %v484 = vpop.f32.mrf.mxu0
      %485 = vmatprep.mubr.f32.mxu0 0.0
      %486 = vmatmul.mubr.f32.gmra.mxu0 %v378
      %v487 = vpop.f32.mrf.mxu0
      %v488 = vadd.f32 %v414, %v487
      %v489 = vpop.f32.mrf.mxu0
      %490 = vmatprep.mubr.f32.mxu0 0.0
      %491 = vmatmul.mubr.f32.gmra.mxu0 %v379
      %v492 = vpop.f32.mrf.mxu0
      %v493 = vadd.f32 %v414, %v492
      %v494 = vpop.f32.mrf.mxu0
      %495 = vmatprep.mubr.f32.mxu0 0.0
      %496 = vmatmul.mubr.f32.gmra.mxu0 %v380
      %v497 = vpop.f32.mrf.mxu0
      %v498 = vadd.f32 %v414, %v497
      %v499 = vpop.f32.mrf.mxu0
      %500 = vmatprep.mubr.f32.mxu0 0.0
      %501 = vmatmul.mubr.f32.gmra.mxu0 %v381
      %v502 = vpop.f32.mrf.mxu0
      %v503 = vadd.f32 %v414, %v502
      %v504 = vpop.f32.mrf.mxu0
      %505 = vmatprep.mubr.f32.mxu0 0.0
      %506 = vmatmul.mubr.f32.gmra.mxu0 %v382
      %v507 = vpop.f32.mrf.mxu0
      %v508 = vadd.f32 %v414, %v507
      %v509 = vpop.f32.mrf.mxu0
      %510 = vmatprep.mubr.f32.mxu0 0.0
      %511 = vmatmul.mubr.f32.gmra.mxu0 %v383
      %v512 = vpop.f32.mrf.mxu0
      %v513 = vadd.f32 %v414, %v512
      %v514 = vpop.f32.mrf.mxu0
      %515 = vmatprep.mubr.f32.mxu0 0.0
      %516 = vmatmul.mubr.f32.gmra.mxu0 %v384
      %v517 = vpop.f32.mrf.mxu0
      %v518 = vadd.f32 %v414, %v517
      %v519 = vpop.f32.mrf.mxu0
      %520 = vmatprep.mubr.f32.mxu0 0.0
      %521 = vmatmul.mubr.f32.gmra.mxu0 %v385
      %v522 = vpop.f32.mrf.mxu0
      %v523 = vadd.f32 %v414, %v522
      %v524 = vpop.f32.mrf.mxu0
      %525 = vmatprep.mubr.f32.mxu0 0.0
      %526 = vmatmul.mubr.f32.gmra.mxu0 %v386
      %v527 = vpop.f32.mrf.mxu0
      %v528 = vadd.f32 %v414, %v527
      %v529 = vpop.f32.mrf.mxu0
      %530 = vmatprep.mubr.f32.mxu0 0.0
      %531 = vmatmul.mubr.f32.gmra.mxu0 %v387
      %v532 = vpop.f32.mrf.mxu0
      %v533 = vadd.f32 %v414, %v532
      %v534 = vpop.f32.mrf.mxu0
      %535 = vmatprep.mubr.f32.mxu0 0.0
      %536 = vmatmul.mubr.f32.gmra.mxu0 %v388
      %v537 = vpop.f32.mrf.mxu0
      %v538 = vadd.f32 %v414, %v537
      %v539 = vpop.f32.mrf.mxu0
      %540 = vmatprep.mubr.f32.mxu0 0.0
      %541 = vmatmul.mubr.f32.gmra.mxu0 %v389
      %v542 = vpop.f32.mrf.mxu0
      %v543 = vadd.f32 %v414, %v542
      %v544 = vpop.f32.mrf.mxu0
      %545 = vmatprep.mubr.f32.mxu0 0.0
      %546 = vmatmul.mubr.f32.gmra.mxu0 %v390
      %v547 = vpop.f32.mrf.mxu0
      %v548 = vadd.f32 %v414, %v547
      %v549 = vpop.f32.mrf.mxu0
      %550 = vmatprep.mubr.f32.mxu0 0.0
      %551 = vmatmul.mubr.f32.gmra.mxu0 %v391
      %v552 = vpop.f32.mrf.mxu0
      %v553 = vadd.f32 %v414, %v552
      %v554 = vpop.f32.mrf.mxu0
      %555 = vmatprep.mubr.f32.mxu0 0.0
      %556 = vmatmul.mubr.f32.gmra.mxu0 %v392
      %v557 = vpop.f32.mrf.mxu0
      %v558 = vadd.f32 %v414, %v557
      %v559 = vpop.f32.mrf.mxu0
      %560 = vdwg.mxu0
      %v561 = vmax.f32 %v483, 0.0
      %v562 = vmax.f32 %v488, 0.0
      %v563 = vmax.f32 %v493, 0.0
      %v564 = vmax.f32 %v498, 0.0
      %v565 = vmax.f32 %v503, 0.0
      %v566 = vmax.f32 %v508, 0.0
      %v567 = vmax.f32 %v513, 0.0
      %v568 = vmax.f32 %v518, 0.0
      %v569 = vmax.f32 %v523, 0.0
      %v570 = vmax.f32 %v528, 0.0
      %v571 = vmax.f32 %v533, 0.0
      %v572 = vmax.f32 %v538, 0.0
      %v573 = vmax.f32 %v543, 0.0
      %v574 = vmax.f32 %v548, 0.0
      %v575 = vmax.f32 %v553, 0.0
      %v576 = vmax.f32 %v558, 0.0
      %v577 = vld [vmem:[#allocation9] sm:$0xff]
      %v578 = vld [vmem:[#allocation9 + $0x8] sm:$0xff]
      %v579 = vld [vmem:[#allocation9 + $0x10] sm:$0xff]
      %v580 = vld [vmem:[#allocation9 + $0x18] sm:$0xff]
      %v581 = vld [vmem:[#allocation9 + $0x20] sm:$0xff]
      %v582 = vld [vmem:[#allocation9 + $0x28] sm:$0xff]
      %v583 = vld [vmem:[#allocation9 + $0x30] sm:$0xff]
      %v584 = vld [vmem:[#allocation9 + $0x38] sm:$0xff]
      %v585 = vld [vmem:[#allocation9 + $0x40] sm:$0xff]
      %v586 = vld [vmem:[#allocation9 + $0x48] sm:$0xff]
      %v587 = vld [vmem:[#allocation9 + $0x50] sm:$0xff]
      %v588 = vld [vmem:[#allocation9 + $0x58] sm:$0xff]
      %v589 = vld [vmem:[#allocation9 + $0x60] sm:$0xff]
      %v590 = vld [vmem:[#allocation9 + $0x68] sm:$0xff]
      %v591 = vld [vmem:[#allocation9 + $0x70] sm:$0xff]
      %v592 = vld [vmem:[#allocation9 + $0x78] sm:$0xff]
      %593 = vmatprep.subr.mxu0 0.0
      %594 = vmatpush1.msra.mxu0 %v592
      %595 = vmatprep.subr.mxu0 0.0
      %596 = vmatpush1.msra.mxu0 %v591
      %597 = vmatprep.subr.mxu0 0.0
      %598 = vmatpush1.msra.mxu0 %v590
      %599 = vmatprep.subr.mxu0 0.0
      %600 = vmatpush1.msra.mxu0 %v589
      %601 = vmatprep.subr.mxu0 0.0
      %602 = vmatpush1.msra.mxu0 %v588
      %603 = vmatprep.subr.mxu0 0.0
      %604 = vmatpush1.msra.mxu0 %v587
      %605 = vmatprep.subr.mxu0 0.0
      %606 = vmatpush1.msra.mxu0 %v586
      %607 = vmatprep.subr.mxu0 0.0
      %608 = vmatpush1.msra.mxu0 %v585
      %609 = vmatprep.subr.mxu0 0.0
      %610 = vmatpush1.msra.mxu0 %v584
      %611 = vmatprep.subr.mxu0 0.0
      %612 = vmatpush1.msra.mxu0 %v583
      %613 = vmatprep.subr.mxu0 0.0
      %614 = vmatpush1.msra.mxu0 %v582
      %615 = vmatprep.subr.mxu0 0.0
      %616 = vmatpush1.msra.mxu0 %v581
      %617 = vmatprep.subr.mxu0 0.0
      %618 = vmatpush1.msra.mxu0 %v580
      %619 = vmatprep.subr.mxu0 0.0
      %620 = vmatpush1.msra.mxu0 %v579
      %621 = vmatprep.subr.mxu0 0.0
      %622 = vmatpush1.msra.mxu0 %v578
      %623 = vmatprep.subr.mxu0 0.0
      %624 = vmatpush1.msra.mxu0 %v577
      %625 = vmatprep.subr.mxu0 0.0
      %626 = vmatpush2.msra.mxu0 0.0
      %627 = vmatprep.subr.mxu0 0.0
      %628 = vmatpush2.msra.mxu0 0.0
      %629 = vmatprep.subr.mxu0 0.0
      %630 = vmatpush2.msra.mxu0 0.0
      %631 = vmatprep.subr.mxu0 0.0
      %632 = vmatpush2.msra.mxu0 0.0
      %633 = vmatprep.subr.mxu0 0.0
      %634 = vmatpush2.msra.mxu0 0.0
      %635 = vmatprep.subr.mxu0 0.0
      %636 = vmatpush2.msra.mxu0 0.0
      %637 = vmatprep.subr.mxu0 0.0
      %638 = vmatpush2.msra.mxu0 0.0
      %639 = vmatprep.subr.mxu0 0.0
      %640 = vmatpush2.msra.mxu0 0.0
      %641 = vmatprep.subr.mxu0 0.0
      %642 = vmatpush2.msra.mxu0 0.0
      %643 = vmatprep.subr.mxu0 0.0
      %644 = vmatpush2.msra.mxu0 0.0
      %645 = vmatprep.subr.mxu0 0.0
      %646 = vmatpush2.msra.mxu0 0.0
      %647 = vmatprep.subr.mxu0 0.0
      %648 = vmatpush2.msra.mxu0 0.0
      %649 = vmatprep.subr.mxu0 0.0
      %650 = vmatpush2.msra.mxu0 0.0
      %651 = vmatprep.subr.mxu0 0.0
      %652 = vmatpush2.msra.mxu0 0.0
      %653 = vmatprep.subr.mxu0 0.0
      %654 = vmatpush2.msra.mxu0 0.0
      %655 = vmatprep.subr.mxu0 0.0
      %656 = vmatpush2.msra.mxu0 0.0
      %657 = vmatprep.mubr.f32.mxu0 0.0
      %658 = vmatmul.mubr.f32.gmra.mxu0 %v561
      %v659 = vpop.f32.mrf.mxu0
      %v660 = vadd.f32 0.0, %v659
      %v661 = vpop.f32.mrf.mxu0
      %662 = vmatprep.mubr.f32.mxu0 0.0
      %663 = vmatmul.mubr.f32.gmra.mxu0 %v562
      %v664 = vpop.f32.mrf.mxu0
      %v665 = vadd.f32 0.0, %v664
      %v666 = vpop.f32.mrf.mxu0
      %667 = vmatprep.mubr.f32.mxu0 0.0
      %668 = vmatmul.mubr.f32.gmra.mxu0 %v563
      %v669 = vpop.f32.mrf.mxu0
      %v670 = vadd.f32 0.0, %v669
      %v671 = vpop.f32.mrf.mxu0
      %672 = vmatprep.mubr.f32.mxu0 0.0
      %673 = vmatmul.mubr.f32.gmra.mxu0 %v564
      %v674 = vpop.f32.mrf.mxu0
      %v675 = vadd.f32 0.0, %v674
      %v676 = vpop.f32.mrf.mxu0
      %677 = vmatprep.mubr.f32.mxu0 0.0
      %678 = vmatmul.mubr.f32.gmra.mxu0 %v565
      %v679 = vpop.f32.mrf.mxu0
      %v680 = vadd.f32 0.0, %v679
      %v681 = vpop.f32.mrf.mxu0
      %682 = vmatprep.mubr.f32.mxu0 0.0
      %683 = vmatmul.mubr.f32.gmra.mxu0 %v566
      %v684 = vpop.f32.mrf.mxu0
      %v685 = vadd.f32 0.0, %v684
      %v686 = vpop.f32.mrf.mxu0
      %687 = vmatprep.mubr.f32.mxu0 0.0
      %688 = vmatmul.mubr.f32.gmra.mxu0 %v567
      %v689 = vpop.f32.mrf.mxu0
      %v690 = vadd.f32 0.0, %v689
      %v691 = vpop.f32.mrf.mxu0
      %692 = vmatprep.mubr.f32.mxu0 0.0
      %693 = vmatmul.mubr.f32.gmra.mxu0 %v568
      %v694 = vpop.f32.mrf.mxu0
      %v695 = vadd.f32 0.0, %v694
      %v696 = vpop.f32.mrf.mxu0
      %697 = vmatprep.mubr.f32.mxu0 0.0
      %698 = vmatmul.mubr.f32.gmra.mxu0 %v569
      %v699 = vpop.f32.mrf.mxu0
      %v700 = vadd.f32 0.0, %v699
      %v701 = vpop.f32.mrf.mxu0
      %702 = vmatprep.mubr.f32.mxu0 0.0
      %703 = vmatmul.mubr.f32.gmra.mxu0 %v570
      %v704 = vpop.f32.mrf.mxu0
      %v705 = vadd.f32 0.0, %v704
      %v706 = vpop.f32.mrf.mxu0
      %707 = vmatprep.mubr.f32.mxu0 0.0
      %708 = vmatmul.mubr.f32.gmra.mxu0 %v571
      %v709 = vpop.f32.mrf.mxu0
      %v710 = vadd.f32 0.0, %v709
      %v711 = vpop.f32.mrf.mxu0
      %712 = vmatprep.mubr.f32.mxu0 0.0
      %713 = vmatmul.mubr.f32.gmra.mxu0 %v572
      %v714 = vpop.f32.mrf.mxu0
      %v715 = vadd.f32 0.0, %v714
      %v716 = vpop.f32.mrf.mxu0
      %717 = vmatprep.mubr.f32.mxu0 0.0
      %718 = vmatmul.mubr.f32.gmra.mxu0 %v573
      %v719 = vpop.f32.mrf.mxu0
      %v720 = vadd.f32 0.0, %v719
      %v721 = vpop.f32.mrf.mxu0
      %722 = vmatprep.mubr.f32.mxu0 0.0
      %723 = vmatmul.mubr.f32.gmra.mxu0 %v574
      %v724 = vpop.f32.mrf.mxu0
      %v725 = vadd.f32 0.0, %v724
      %v726 = vpop.f32.mrf.mxu0
      %727 = vmatprep.mubr.f32.mxu0 0.0
      %728 = vmatmul.mubr.f32.gmra.mxu0 %v575
      %v729 = vpop.f32.mrf.mxu0
      %v730 = vadd.f32 0.0, %v729
      %v731 = vpop.f32.mrf.mxu0
      %732 = vmatprep.mubr.f32.mxu0 0.0
      %733 = vmatmul.mubr.f32.gmra.mxu0 %v576
      %v734 = vpop.f32.mrf.mxu0
      %v735 = vadd.f32 0.0, %v734
      %v736 = vpop.f32.mrf.mxu0
      %737 = vdwg.mxu0
      %v738 = vpack.c.bf16 %v665, %v660
      %v739 = vpack.c.bf16 %v675, %v670
      %v740 = vpack.c.bf16 %v685, %v680
      %v741 = vpack.c.bf16 %v695, %v690
      %v742 = vpack.c.bf16 %v705, %v700
      %v743 = vpack.c.bf16 %v715, %v710
      %v744 = vpack.c.bf16 %v725, %v720
      %v745 = vpack.c.bf16 %v735, %v730
      %v754 = vunpack.c.l.b16 %v738
      %v755 = vunpack.c.h.b16 %v738
      %v756 = vunpack.c.l.b16 %v739
      %v757 = vunpack.c.h.b16 %v739
      %v758 = vunpack.c.l.b16 %v740
      %v759 = vunpack.c.h.b16 %v740
      %v760 = vunpack.c.l.b16 %v741
      %v761 = vunpack.c.h.b16 %v741
      %v762 = vunpack.c.l.b16 %v742
      %v763 = vunpack.c.h.b16 %v742
      %v764 = vunpack.c.l.b16 %v743
      %v765 = vunpack.c.h.b16 %v743
      %v766 = vunpack.c.l.b16 %v744
      %v767 = vunpack.c.h.b16 %v744
      %v768 = vunpack.c.l.b16 %v745
      %v769 = vunpack.c.h.b16 %v745
      %v770 = vpack.c.b16 %v754, %v754
      %v771 = vpack.c.b16 %v755, %v755
      %v772 = vpack.c.b16 %v756, %v756
      %v773 = vpack.c.b16 %v757, %v757
      %v774 = vpack.c.b16 %v758, %v758
      %v775 = vpack.c.b16 %v759, %v759
      %v776 = vpack.c.b16 %v760, %v760
      %v777 = vpack.c.b16 %v761, %v761
      %v778 = vpack.c.b16 %v762, %v762
      %v779 = vpack.c.b16 %v763, %v763
      %v780 = vpack.c.b16 %v764, %v764
      %v781 = vpack.c.b16 %v765, %v765
      %v782 = vpack.c.b16 %v766, %v766
      %v783 = vpack.c.b16 %v767, %v767
      %v784 = vpack.c.b16 %v768, %v768
      %v785 = vpack.c.b16 %v769, %v769
      %802 = vst [vmem:[#allocation11] sm:$0xf] %v770
      %803 = vst [vmem:[#allocation11 + $0x4] sm:$0xf] %v771
      %804 = vst [vmem:[#allocation11 + $0x8] sm:$0xf] %v772
      %805 = vst [vmem:[#allocation11 + $0xc] sm:$0xf] %v773
      %806 = vst [vmem:[#allocation11 + $0x10] sm:$0xf] %v774
      %807 = vst [vmem:[#allocation11 + $0x14] sm:$0xf] %v775
      %808 = vst [vmem:[#allocation11 + $0x18] sm:$0xf] %v776
      %809 = vst [vmem:[#allocation11 + $0x1c] sm:$0xf] %v777
      %810 = vst [vmem:[#allocation11 + $0x20] sm:$0xf] %v778
      %811 = vst [vmem:[#allocation11 + $0x24] sm:$0xf] %v779
      %812 = vst [vmem:[#allocation11 + $0x28] sm:$0xf] %v780
      %813 = vst [vmem:[#allocation11 + $0x2c] sm:$0xf] %v781
      %814 = vst [vmem:[#allocation11 + $0x30] sm:$0xf] %v782
      %815 = vst [vmem:[#allocation11 + $0x34] sm:$0xf] %v783
      %816 = vst [vmem:[#allocation11 + $0x38] sm:$0xf] %v784
      %817 = vst [vmem:[#allocation11 + $0x3c] sm:$0xf] %v785
    $region49: #{tpu_custom_call.1} parent=1 // pred_fallthru
      _
    // Predicated region
    $region50: #{tpu_custom_call.1} parent=1 // pred_check
      _
    $region51: #{tpu_custom_call.1} parent=1 // pred_check_branch
      %819 = sbr.rel (0) target = $region53
    $region52: #{tpu_custom_call.1} parent=1 // pred_region
      %s821 = ssub.s32 1024, 1024
      %822 = vsyncadd [#allocation5], %s821
      %s823 = sshll.u32 [#allocation11], 4
      %s824 = int_to_ptr.vmem [resolvable:$true] %s823
      %829 = dma.vmem_to_hbm [thread:$0]  %s824, 1024, %s5, [#allocation5], 64, 64, 4
    $region53: #{tpu_custom_call.1} parent=1 // pred_fallthru
      _
    // Predicated region
    $region54: #{tpu_custom_call.1} parent=1 // pred_check
      _
    $region55: #{tpu_custom_call.1} parent=1 // pred_check_branch
      %831 = sbr.rel (0) target = $region57
    $region56: #{tpu_custom_call.1} parent=1 // pred_region
      %832 = dma.done [#allocation5], 1024
    $region57: #{tpu_custom_call.1} parent=1 // pred_fallthru
      _
    %833 = vsyncpa [#allocation4], 1
    %834 = vsyncpa [#allocation7], 1
    %835 = vsyncpa [#allocation10], 1
    %836 = vsyncpa [#allocation5], 1

</llo_original>
